<compile_context>
chip_gen: v5e
topology: v5e:2x2
jax: 0.10.0
libtpu: 0.0.40
codegen_flags: <defaults>
</compile_context>

<pallas_src>
import functools

import jax
import jax.numpy as jnp
from jax.experimental import pallas as pl
from jax.experimental.pallas import tpu as pltpu

EPS = 1e-5


def _round_up(a, m):
    return ((a + m - 1) // m) * m


def _scoped_vmem_bytes():
    """Per-generation scoped-VMEM budget requested from the compiler."""
    cap = 64 << 20                              # safe fallback (v7x-sized)
    try:
        info = pltpu.get_tpu_info()
        cap = int(getattr(info, "vmem_capacity_bytes", cap))
    except Exception:
        pass
    # ~half of physical, capped at 48 MiB (v5e/v6e -> 48 MiB, v7x -> 32 MiB).
    return min(cap // 2, 48 << 20)


def _largest_divisor(total, step, cap):
    """Largest multiple of `step` that divides `total` and is <= cap (>= step)."""
    best = step
    d = step
    limit = min(total, max(step, cap))
    while d <= limit:
        if total % d == 0:
            best = d
        d += step
    return best


def _pick_tiles(nc_pad, hw_pad, row_mult, budget_elems):
    """(R, T) block: lane-dense first (T), then pack rows (R)."""
    t_cap = max(128, budget_elems // row_mult)
    T = _largest_divisor(hw_pad, 128, t_cap)
    r_cap = max(row_mult, budget_elems // T)
    R = _largest_divisor(nc_pad, row_mult, r_cap)
    return R, T


# ---------------------------------------------------------------------------
# Single-pass kernel: whole tensor resident in VMEM (x read from HBM once).
# ---------------------------------------------------------------------------
def _fused_kernel(x_ref, gamma_ref, beta_ref, o_ref, *, inv_count):
    x = x_ref[...].astype(jnp.float32)                       # (N, C, HW)
    s = jnp.sum(jnp.sum(x, axis=2, keepdims=True), axis=0, keepdims=True)
    sq = jnp.sum(jnp.sum(x * x, axis=2, keepdims=True), axis=0, keepdims=True)
    mean = s * inv_count                                     # (1, C, 1)
    var = jnp.maximum(sq * inv_count - mean * mean, 0.0)     # clamp cancellation
    scale = gamma_ref[...] * jax.lax.rsqrt(var + EPS)
    shift = beta_ref[...] - mean * scale
    o_ref[...] = jnp.maximum(x * scale + shift, 0.0).astype(o_ref.dtype)


# ---------------------------------------------------------------------------
# Streaming pass 1: per-row (= per (n, c)) sum / sum-of-squares accumulators.
# ---------------------------------------------------------------------------
def _row_stats_kernel(x_ref, sum_ref, sq_ref):
    h = pl.program_id(1)

    @pl.when(h == 0)
    def _init():
        sum_ref[...] = jnp.zeros_like(sum_ref)
        sq_ref[...] = jnp.zeros_like(sq_ref)

    x = x_ref[...].astype(jnp.float32)                       # (R, T)
    sum_ref[...] += jnp.sum(x, axis=1, keepdims=True)        # XLU reduce -> (R, 1)
    sq_ref[...] += jnp.sum(x * x, axis=1, keepdims=True)


# ---------------------------------------------------------------------------
# Streaming pass 2: relu(x * scale_row + shift_row).
# ---------------------------------------------------------------------------
def _apply_kernel(x_ref, scale_ref, shift_ref, o_ref):
    x = x_ref[...].astype(jnp.float32)                       # (R, T)
    y = x * scale_ref[...] + shift_ref[...]                  # (R, 1) broadcasts over lanes
    o_ref[...] = jnp.maximum(y, 0.0).astype(o_ref.dtype)


@functools.partial(jax.jit, static_argnames=("single_pass",))
def bn_re_forward(x_nchw, gamma, beta, single_pass=None):
    """BatchNorm2d (training-mode batch stats) + ReLU. x_nchw: [N, C, H, W]."""
    N, C, H, W = x_nchw.shape
    HW = H * W
    NC = N * C
    itemsize = jnp.dtype(x_nchw.dtype).itemsize
    row_mult = max(8, 32 // itemsize)            # sublane packing: 8/16/32 for 4/2/1 B
    inv_count = 1.0 / float(N * HW)

    scoped = _scoped_vmem_bytes()
    gamma_f = gamma.reshape(C).astype(jnp.float32)
    beta_f = beta.reshape(C).astype(jnp.float32)

    # Decide path: single-pass (x read once) when padded tensor + f32 temps fit
    # comfortably inside the scoped-VMEM budget on this generation.
    if single_pass is None:
        c_pad = _round_up(C, row_mult)
        hw_lane = _round_up(HW, 128)
        f32_bytes = N * c_pad * hw_lane * 4
        native_bytes = N * c_pad * hw_lane * itemsize
        single_pass = (2 * native_bytes + 3 * f32_bytes) <= int(0.75 * scoped)

    if single_pass:
        x3 = x_nchw.reshape(N, C, HW)            # free reshape, no transpose
        out3 = pl.pallas_call(
            functools.partial(_fused_kernel, inv_count=inv_count),
            out_shape=jax.ShapeDtypeStruct((N, C, HW), x3.dtype),
            compiler_params=pltpu.CompilerParams(vmem_limit_bytes=scoped),
        )(x3, gamma_f.reshape(1, C, 1), beta_f.reshape(1, C, 1))
        return out3.reshape(N, C, H, W)

    # ---- streaming two-pass path --------------------------------------------
    NC_pad = _round_up(NC, row_mult)
    HW_pad = _round_up(HW, 128)
    x2 = x_nchw.reshape(NC, HW)
    padded = (NC_pad != NC) or (HW_pad != HW)
    if padded:
        # Zero padding contributes 0 to sum / sum-of-squares; sliced off at the end.
        x2 = jnp.pad(x2, ((0, NC_pad - NC), (0, HW_pad - HW)))

    block_elems = max(128 * row_mult, (scoped // 10) // 4)   # ~f32-equivalent budget
    R, T = _pick_tiles(NC_pad, HW_pad, row_mult, block_elems)
    grid = (NC_pad // R, HW_pad // T)

    # Pass 1: per-row sums (rows "parallel" -> both v7x TCs; hw axis = reduction).
    row_sum, row_sq = pl.pallas_call(
        _row_stats_kernel,
        out_shape=(jax.ShapeDtypeStruct((NC_pad, 1), jnp.float32),
                   jax.ShapeDtypeStruct((NC_pad, 1), jnp.float32)),
        grid_spec=pltpu.PrefetchScalarGridSpec(
            num_scalar_prefetch=0,
            grid=grid,
            in_specs=[pl.BlockSpec((R, T), lambda r, h: (r, h))],
            out_specs=(pl.BlockSpec((R, 1), lambda r, h: (r, 0)),
                       pl.BlockSpec((R, 1), lambda r, h: (r, 0))),
        ),
        compiler_params=pltpu.CompilerParams(
            dimension_semantics=("parallel", "arbitrary"),
            vmem_limit_bytes=scoped),
    )(x2)

    # Tiny per-channel fold in plain JAX (C values; negligible).
    ch_sum = row_sum[:NC, 0].reshape(N, C).sum(axis=0)
    ch_sq = row_sq[:NC, 0].reshape(N, C).sum(axis=0)
    mean = ch_sum * inv_count
    var = jnp.maximum(ch_sq * inv_count - mean * mean, 0.0)  # clamp cancellation
    scale = gamma_f * jax.lax.rsqrt(var + EPS)
    shift = beta_f - mean * scale
    scale_rows = jnp.tile(scale, N)                          # row n*C + c -> channel c
    shift_rows = jnp.tile(shift, N)
    if NC_pad != NC:
        scale_rows = jnp.pad(scale_rows, (0, NC_pad - NC))
        shift_rows = jnp.pad(shift_rows, (0, NC_pad - NC))
    scale_rows = scale_rows.reshape(NC_pad, 1)
    shift_rows = shift_rows.reshape(NC_pad, 1)

    # Pass 2: normalize + affine + ReLU, fully parallel streaming.
    out2 = pl.pallas_call(
        _apply_kernel,
        out_shape=jax.ShapeDtypeStruct((NC_pad, HW_pad), x2.dtype),
        grid_spec=pltpu.PrefetchScalarGridSpec(
            num_scalar_prefetch=0,
            grid=grid,
            in_specs=[pl.BlockSpec((R, T), lambda r, h: (r, h)),
                      pl.BlockSpec((R, 1), lambda r, h: (r, 0)),
                      pl.BlockSpec((R, 1), lambda r, h: (r, 0))],
            out_specs=pl.BlockSpec((R, T), lambda r, h: (r, h)),
        ),
        compiler_params=pltpu.CompilerParams(
            dimension_semantics=("parallel", "parallel"),
            vmem_limit_bytes=scoped),
    )(x2, scale_rows, shift_rows)

    if padded:
        out2 = out2[:NC, :HW]
    return out2.reshape(N, C, H, W)


def bn_re_reference(x_nchw, gamma, beta):
    x = x_nchw.astype(jnp.float32)
    mean = jnp.mean(x, axis=(0, 2, 3), keepdims=True)
    var = jnp.mean((x - mean) ** 2, axis=(0, 2, 3), keepdims=True)
    y = (x - mean) * jax.lax.rsqrt(var + EPS)
    y = y * gamma.reshape(1, -1, 1, 1) + beta.reshape(1, -1, 1, 1)
    return jnp.maximum(y, 0.0)


if __name__ == "__main__":
    key = jax.random.PRNGKey(0)
    kx, kg, kb = jax.random.split(key, 3)
    N, C, H, W = 2, 4, 16, 16
    x = jax.random.normal(kx, (N, C, H, W), dtype=jnp.float32) * 1.7 + 0.3

    # PyTorch BatchNorm2d default init is gamma=1, beta=0; perturb slightly to
    # exercise the affine path (kernel and reference use the same values).
    gamma = 1.0 + 0.1 * jax.random.normal(kg, (C,), dtype=jnp.float32)
    beta = 0.1 * jax.random.normal(kb, (C,), dtype=jnp.float32)

    ref = bn_re_reference(x, gamma, beta)

    # Auto path (single-pass VMEM-resident at this size).
    out_fused = jax.block_until_ready(bn_re_forward(x, gamma, beta))
    # Also exercise the two-pass streaming path at this small shape.
    out_stream = jax.block_until_ready(bn_re_forward(x, gamma, beta, single_pass=False))

    assert out_fused.shape == (N, C, H, W)
    assert jnp.allclose(out_fused, ref, atol=1e-4, rtol=1e-4), float(
        jnp.max(jnp.abs(out_fused - ref)))
    assert jnp.allclose(out_stream, ref, atol=1e-4, rtol=1e-4), float(
        jnp.max(jnp.abs(out_stream - ref)))

    print("KERNEL_OK")
</pallas_src>

<mosaic_0001>
module attributes {stable_mosaic.version = 11 : i64} {
  func.func @_fused_kernel(%arg0: memref<2x4x256xf32, #tpu.memory_space<vmem>>, %arg1: memref<1x4x1xf32, #tpu.memory_space<vmem>>, %arg2: memref<1x4x1xf32, #tpu.memory_space<vmem>>, %arg3: memref<2x4x256xf32, #tpu.memory_space<vmem>>) attributes {dimension_semantics = [], scalar_prefetch = 0 : i64, scratch_operands = 0 : i64, tpu.core_type = #tpu.core_type<tc>} {
    %c0 = arith.constant 0 : index
    %c0_0 = arith.constant 0 : index
    %c0_1 = arith.constant 0 : index
    %0 = vector.load %arg0[%c0, %c0_0, %c0_1] : memref<2x4x256xf32, #tpu.memory_space<vmem>>, vector<2x4x256xf32>
    %cst = arith.constant dense<0.000000e+00> : vector<2x4xf32>
    %1 = vector.multi_reduction <add>, %0, %cst [2] : vector<2x4x256xf32> to vector<2x4xf32>
    %2 = vector.shape_cast %1 : vector<2x4xf32> to vector<2x4x1xf32>
    %cst_2 = arith.constant dense<0.000000e+00> : vector<4x1xf32>
    %3 = vector.multi_reduction <add>, %2, %cst_2 [0] : vector<2x4x1xf32> to vector<4x1xf32>
    %4 = vector.shape_cast %3 : vector<4x1xf32> to vector<1x4x1xf32>
    %5 = arith.mulf %0, %0 : vector<2x4x256xf32>
    %cst_3 = arith.constant dense<0.000000e+00> : vector<2x4xf32>
    %6 = vector.multi_reduction <add>, %5, %cst_3 [2] : vector<2x4x256xf32> to vector<2x4xf32>
    %7 = vector.shape_cast %6 : vector<2x4xf32> to vector<2x4x1xf32>
    %cst_4 = arith.constant dense<0.000000e+00> : vector<4x1xf32>
    %8 = vector.multi_reduction <add>, %7, %cst_4 [0] : vector<2x4x1xf32> to vector<4x1xf32>
    %9 = vector.shape_cast %8 : vector<4x1xf32> to vector<1x4x1xf32>
    %cst_5 = arith.constant 0.001953125 : f32
    %10 = vector.broadcast %cst_5 : f32 to vector<1x4x1xf32>
    %11 = arith.mulf %4, %10 : vector<1x4x1xf32>
    %cst_6 = arith.constant 0.001953125 : f32
    %12 = vector.broadcast %cst_6 : f32 to vector<1x4x1xf32>
    %13 = arith.mulf %9, %12 : vector<1x4x1xf32>
    %14 = arith.mulf %11, %11 : vector<1x4x1xf32>
    %15 = arith.subf %13, %14 : vector<1x4x1xf32>
    %cst_7 = arith.constant 0.000000e+00 : f32
    %16 = vector.broadcast %cst_7 : f32 to vector<1x4x1xf32>
    %17 = arith.maximumf %15, %16 : vector<1x4x1xf32>
    %c0_8 = arith.constant 0 : index
    %c0_9 = arith.constant 0 : index
    %c0_10 = arith.constant 0 : index
    %18 = vector.load %arg1[%c0_8, %c0_9, %c0_10] : memref<1x4x1xf32, #tpu.memory_space<vmem>>, vector<1x4x1xf32>
    %cst_11 = arith.constant 9.99999974E-6 : f32
    %19 = vector.broadcast %cst_11 : f32 to vector<1x4x1xf32>
    %20 = arith.addf %17, %19 : vector<1x4x1xf32>
    %21 = math.rsqrt %20 : vector<1x4x1xf32>
    %22 = arith.mulf %18, %21 : vector<1x4x1xf32>
    %c0_12 = arith.constant 0 : index
    %c0_13 = arith.constant 0 : index
    %c0_14 = arith.constant 0 : index
    %23 = vector.load %arg2[%c0_12, %c0_13, %c0_14] : memref<1x4x1xf32, #tpu.memory_space<vmem>>, vector<1x4x1xf32>
    %24 = arith.mulf %11, %22 : vector<1x4x1xf32>
    %25 = arith.subf %23, %24 : vector<1x4x1xf32>
    %26 = vector.broadcast %22 : vector<1x4x1xf32> to vector<2x4x256xf32>
    %27 = arith.mulf %0, %26 : vector<2x4x256xf32>
    %28 = vector.broadcast %25 : vector<1x4x1xf32> to vector<2x4x256xf32>
    %29 = arith.addf %27, %28 : vector<2x4x256xf32>
    %cst_15 = arith.constant 0.000000e+00 : f32
    %30 = vector.broadcast %cst_15 : f32 to vector<2x4x256xf32>
    %31 = arith.maximumf %29, %30 : vector<2x4x256xf32>
    %c0_16 = arith.constant 0 : index
    %c0_17 = arith.constant 0 : index
    %c0_18 = arith.constant 0 : index
    %32 = vector.load %arg3[%c0_16, %c0_17, %c0_18] : memref<2x4x256xf32, #tpu.memory_space<vmem>>, vector<2x4x256xf32>
    tpu.vector_store %arg3[%c0_16, %c0_17, %c0_18], %31 {strides = array<i32>} : memref<2x4x256xf32, #tpu.memory_space<vmem>>, vector<2x4x256xf32>,
    return
  }
}

</mosaic_0001>

<llo_original>
// kernel: bn_re_forward.1
$region0: #{bn_re_forward.1}
  #allocation0 [shape = 'u32[]', space=smem, size = 0x4, offset = 0x4, fixed_abs, tag = 'smem constant byte address 0x4 - core index']
  #allocation1 [shape = 'u32[72,128]{1,0:T(1,128)}', space=vmem, size = 0x9000, scoped, tag = 'internal scratch']
  %s0 = inlined_call_operand.vmem [shape: f32[2,4,256], index: 0, kind: input, shape index: {}]
  %s1 = inlined_call_operand.vmem [shape: f32[1,4,1], index: 1, kind: input, shape index: {}]
  %s2 = inlined_call_operand.vmem [shape: f32[1,4,1], index: 2, kind: input, shape index: {}]
  %s3 = inlined_call_operand.vmem [shape: f32[2,4,256], index: 3, kind: output, shape index: {}]
  %s4 = sld [smem:[#allocation0]]
  $region22: #{bn_re_forward.1} parent=0
    _
  %s6 = ssub.s32 1, %s4
  %s7 = scalar_select 0, %s6, %s4
  // Predicated region
  $region2: #{bn_re_forward.1} parent=0 // pred_check
    _
  $region3: #{bn_re_forward.1} parent=0 // pred_check_branch
    %9 = sbr.rel (0) target = $region5
  $region4: #{bn_re_forward.1} parent=0 // pred_region
    _
  $region5: #{bn_re_forward.1} parent=0 // pred_fallthru
    _
  // Predicated region
  $region6: #{bn_re_forward.1} parent=0 // pred_check
    _
  $region7: #{bn_re_forward.1} parent=0 // pred_check_branch
    %11 = sbr.rel (0) target = $region9
  $region8: #{bn_re_forward.1} parent=0 // pred_region
    _
  $region9: #{bn_re_forward.1} parent=0 // pred_fallthru
    _
  // Predicated region
  $region10: #{bn_re_forward.1} parent=0 // pred_check
    _
  $region11: #{bn_re_forward.1} parent=0 // pred_check_branch
    %13 = sbr.rel (0) target = $region13
  $region12: #{bn_re_forward.1} parent=0 // pred_region
    _
  $region13: #{bn_re_forward.1} parent=0 // pred_fallthru
    _
  %v14 = vld [vmem:[%s0] sm:$0xff]
  %v15 = vld [vmem:[%s0 + $0x8] sm:$0xff]
  %18 = vst [vmem:[#allocation1] ss:$2 sm:$0xff] %v14
  %v19 = vld.sshfl [vmem:[#allocation1] sm:$0xff pattern:$0x75316420]
  %v20 = vld.sshfl [vmem:[#allocation1 + $0x8] sm:$0xff pattern:$0x75316420]
  %s21 = scalar_lea.vmem [#allocation1], 16
  %22 = vst [vmem:[%s21] ss:$2 sm:$0xff] %v15
  %v23 = vld.sshfl [vmem:[#allocation1 + $0x10] sm:$0xff pattern:$0x75316420]
  %v24 = vld.sshfl [vmem:[#allocation1 + $0x18] sm:$0xff pattern:$0x75316420]
  %vm29 = vcmask 1043456
  %v30 = vsel %vm29, %v19, 0.0
  %v31 = vsel %vm29, %v20, 0.0
  %v32 = vadd.f32 %v30, %v31
  %33 = vadd.xlane.f32.xlu0 %v32
  %v34 = vpop.xlane.xlu0 %33
  %v35 = vsel %vm29, %v23, 0.0
  %v36 = vsel %vm29, %v24, 0.0
  %v37 = vadd.f32 %v35, %v36
  %38 = vadd.xlane.f32.xlu0 %v37
  %v39 = vpop.xlane.xlu0 %38
  %v40 = vsel %vm29, %v34, 0.0
  %v41 = vsel %vm29, %v39, 0.0
  %v42 = vadd.f32 %v40, %v41
  %v43 = vmul.f32 %v14, %v14
  %v44 = vmul.f32 %v15, %v15
  %47 = vst [vmem:[#allocation1] ss:$2 sm:$0xff] %v43
  %v48 = vld.sshfl [vmem:[#allocation1] sm:$0xff pattern:$0x75316420]
  %v49 = vld.sshfl [vmem:[#allocation1 + $0x8] sm:$0xff pattern:$0x75316420]
  %s50 = scalar_lea.vmem [#allocation1], 16
  %51 = vst [vmem:[%s50] ss:$2 sm:$0xff] %v44
  %v52 = vld.sshfl [vmem:[#allocation1 + $0x10] sm:$0xff pattern:$0x75316420]
  %v53 = vld.sshfl [vmem:[#allocation1 + $0x18] sm:$0xff pattern:$0x75316420]
  %v58 = vsel %vm29, %v48, 0.0
  %v59 = vsel %vm29, %v49, 0.0
  %v60 = vadd.f32 %v58, %v59
  %61 = vadd.xlane.f32.xlu0 %v60
  %v62 = vpop.xlane.xlu0 %61
  %v63 = vsel %vm29, %v52, 0.0
  %v64 = vsel %vm29, %v53, 0.0
  %v65 = vadd.f32 %v63, %v64
  %66 = vadd.xlane.f32.xlu0 %v65
  %v67 = vpop.xlane.xlu0 %66
  %v68 = vsel %vm29, %v62, 0.0
  %v69 = vsel %vm29, %v67, 0.0
  %v70 = vadd.f32 %v68, %v69
  %v71 = vmul.f32 %v42, 0.001953125
  %v72 = vmul.f32 %v70, 0.001953125
  %v73 = vmul.f32 %v71, %v71
  %v74 = vsub.f32 %v72, %v73
  %v75 = vmax.f32 %v74, 0.0
  %v76 = vld [vmem:[%s1] sm:$0xf]
  %v77 = vadd.f32 %v75, 1e-05
  %v78 = vrsqrt.pop %v77
  %v79 = vmul.f32 %v78, %v77
  %v80 = vmul.f32 %v79, %v78
  %v81 = vmul.f32 0.5, %v80
  %v82 = vsub.f32 1.5, %v81
  %v83 = vmul.f32 %v78, %v82
  %vm84 = vweird.f32 %v77
  %vm85 = vweird.f32 %v78
  %vm86 = vmor %vm84, %vm85
  %v87 = vsel %vm86, %v78, %v83
  %v88 = vmul.f32 %v76, %v87
  %v89 = vld [vmem:[%s2] sm:$0xf]
  %v90 = vmul.f32 %v71, %v88
  %v91 = vsub.f32 %v89, %v90
  %93 = vset.pattern.permute.xlu0 0
  %94 = vperm.xlu0 %93, %v88
  %v95 = vpop.permute.xlu0 %94
  %v97 = vunpack.c.l.s4 839922192
  %v98 = vunpack.c.0.s8 %v97
  %v99 = vperm.slane %v95, %v98
  %v101 = vmul.f32 %v14, %v99
  %v102 = vmul.f32 %v15, %v99
  %104 = vset.pattern.permute.xlu0 0
  %105 = vperm.xlu0 %104, %v91
  %v106 = vpop.permute.xlu0 %105
  %v108 = vunpack.c.l.s4 839922192
  %v109 = vunpack.c.0.s8 %v108
  %v110 = vperm.slane %v106, %v109
  %v112 = vadd.f32 %v101, %v110
  %v113 = vadd.f32 %v102, %v110
  %v114 = vmax.f32 %v112, 0.0
  %v115 = vmax.f32 %v113, 0.0
  %116 = vst [vmem:[%s3] sm:$0xff] %v114
  %117 = vst [vmem:[%s3 + $0x8] sm:$0xff] %v115
  // Predicated region
  $region14: #{bn_re_forward.1} parent=0 // pred_check
    _
  $region15: #{bn_re_forward.1} parent=0 // pred_check_branch
    %119 = sbr.rel (0) target = $region17
  $region16: #{bn_re_forward.1} parent=0 // pred_region
    _
  $region17: #{bn_re_forward.1} parent=0 // pred_fallthru
    _
  // Predicated region
  $region18: #{bn_re_forward.1} parent=0 // pred_check
    _
  $region19: #{bn_re_forward.1} parent=0 // pred_check_branch
    %121 = sbr.rel (0) target = $region21
  $region20: #{bn_re_forward.1} parent=0 // pred_region
    _
  $region21: #{bn_re_forward.1} parent=0 // pred_fallthru
    _

</llo_original>
